<compile_context>
chip_gen: v6e
topology: v6e:2x2x1
jax: 0.10.0
libtpu: 0.0.40
codegen_flags: <defaults>
</compile_context>

<pallas_src>
import jax
import jax.numpy as jnp
from jax.experimental import pallas as pl
from jax.experimental.pallas import tpu as pltpu


def _pick_tile(dim: int, max_tile: int, granule: int) -> int:
    """Largest tile <= max_tile that is a multiple of `granule` and divides `dim`.

    Falls back to the full dimension (single block) if no such tile exists."""
    if dim <= max_tile:
        return dim
    t = (max_tile // granule) * granule
    while t >= granule:
        if dim % t == 0:
            return t
        t -= granule
    return dim


def _vdg_sample_kernel(mean_ref, logvar_ref, eps_ref, out_ref, kl_ref):
    j = pl.program_id(1)

    mean = mean_ref[...].astype(jnp.float32)
    logvar = logvar_ref[...].astype(jnp.float32)
    eps = eps_ref[...].astype(jnp.float32)
    std = jnp.exp(0.5 * logvar)

    # Reparameterized sample: mean + eps * exp(0.5 * logvar)
    out_ref[...] = (mean + eps * std).astype(out_ref.dtype)

    # Partial KL sum for this tile: sum(1 + logvar - mean^2 - exp(logvar)).
    # exp(logvar) == std * std (std already computed) -> one fewer EUP op.
    term = 1.0 + logvar - mean * mean - std * std
    partial = jnp.sum(term, axis=-1, keepdims=True)          # lane reduce (XLU)
    partial = jnp.sum(partial, axis=0, keepdims=True)        # sublane reduce
    partial = partial.reshape(1, 1, 1)

    @pl.when(j == 0)
    def _init():
        kl_ref[...] = jnp.zeros_like(kl_ref)

    kl_ref[...] += partial


def _vdg_kl_kernel(mean_ref, logvar_ref, kl_ref):
    j = pl.program_id(1)

    mean = mean_ref[...].astype(jnp.float32)
    logvar = logvar_ref[...].astype(jnp.float32)
    term = 1.0 + logvar - mean * mean - jnp.exp(logvar)
    partial = jnp.sum(term, axis=-1, keepdims=True)
    partial = jnp.sum(partial, axis=0, keepdims=True).reshape(1, 1, 1)

    @pl.when(j == 0)
    def _init():
        kl_ref[...] = jnp.zeros_like(kl_ref)

    kl_ref[...] += partial


def variational_diagonal_gaussian(z, key, *, sample=True, chunk_dim=1,
                                  max_row_tile=8, max_col_tile=32768):
    """Forward pass of VariationalDiagonalGaussian.

    Args:
      z: (B, 2C, H, W) NCHW input (first C channels = mean, last C = logvar).
      key: JAX PRNG key used to draw eps ~ N(0,1) (replaces torch.randn_like).
      sample: if True return mean + eps*std, else return mean.
      chunk_dim: must be 1 (channel dim) for this kernel.

    Returns:
      (out, kl) with out of shape (B, C, H, W) and kl a scalar (batch-mean KL).
    """
    assert chunk_dim == 1, "kernel implemented for channel-dim chunking"
    B, C2, H, W = z.shape
    assert C2 % 2 == 0
    C = C2 // 2
    N = C * H * W

    # Free view of the contiguous NCHW array: cols [0, N) = mean,
    # cols [N, 2N) = logvar.  No HBM copy for the chunking.
    z2 = z.reshape(B, 2 * N)

    tb = _pick_tile(B, max_row_tile, 1)
    tn = _pick_tile(N, max_col_tile, 128)
    n_bi = B // tb
    n_nj = N // tn

    compiler_params = pltpu.CompilerParams(
        dimension_semantics=("parallel", "arbitrary"))
    itemsize = jnp.dtype(z.dtype).itemsize

    if sample:
        eps = jax.random.normal(key, (B, N), dtype=z.dtype)

        cost = pl.CostEstimate(
            flops=9 * B * N,
            transcendentals=B * N,
            bytes_accessed=3 * B * N * itemsize + B * N * itemsize)

        out_flat, kl_parts = pl.pallas_call(
            _vdg_sample_kernel,
            out_shape=(
                jax.ShapeDtypeStruct((B, N), z.dtype),
                jax.ShapeDtypeStruct((n_bi, 1, 1), jnp.float32),
            ),
            grid_spec=pltpu.PrefetchScalarGridSpec(
                num_scalar_prefetch=0,
                grid=(n_bi, n_nj),
                in_specs=[
                    pl.BlockSpec((tb, tn), lambda i, j: (i, j)),          # mean
                    pl.BlockSpec((tb, tn), lambda i, j: (i, j + n_nj)),   # logvar
                    pl.BlockSpec((tb, tn), lambda i, j: (i, j)),          # eps
                ],
                out_specs=(
                    pl.BlockSpec((tb, tn), lambda i, j: (i, j)),          # sample
                    pl.BlockSpec((1, 1, 1), lambda i, j: (i, 0, 0)),      # KL acc
                ),
            ),
            compiler_params=compiler_params,
            cost_estimate=cost,
        )(z2, z2, eps)
        out = out_flat.reshape(B, C, H, W)
    else:
        # Inference path: no eps, no sample write; KL-only kernel.
        cost = pl.CostEstimate(
            flops=7 * B * N,
            transcendentals=B * N,
            bytes_accessed=2 * B * N * itemsize)

        kl_parts = pl.pallas_call(
            _vdg_kl_kernel,
            out_shape=jax.ShapeDtypeStruct((n_bi, 1, 1), jnp.float32),
            grid_spec=pltpu.PrefetchScalarGridSpec(
                num_scalar_prefetch=0,
                grid=(n_bi, n_nj),
                in_specs=[
                    pl.BlockSpec((tb, tn), lambda i, j: (i, j)),
                    pl.BlockSpec((tb, tn), lambda i, j: (i, j + n_nj)),
                ],
                out_specs=pl.BlockSpec((1, 1, 1), lambda i, j: (i, 0, 0)),
            ),
            compiler_params=compiler_params,
            cost_estimate=cost,
        )(z2, z2)
        out = z2[:, :N].reshape(B, C, H, W)

    # kl = mean_b(-0.5 * sum_features(term_b)) = -0.5/B * sum(all partials)
    kl = (-0.5 / B) * jnp.sum(kl_parts)
    return out, kl


if __name__ == "__main__":
    root = jax.random.PRNGKey(0)
    k_z, k_eps = jax.random.split(root)

    B, C, H, W = 2, 4, 16, 16
    z = jax.random.normal(k_z, (B, 2 * C, H, W), dtype=jnp.float32)

    out, kl = variational_diagonal_gaussian(z, k_eps, sample=True)
    out = jax.block_until_ready(out)
    kl = jax.block_until_ready(kl)

    # ---- correctness checks -------------------------------------------------
    mean_t = z[:, :C]
    logvar_t = z[:, C:]
    std_t = jnp.exp(0.5 * logvar_t)
    kl_ref = jnp.mean(
        -0.5 * jnp.sum(1.0 + logvar_t - mean_t ** 2 - jnp.exp(logvar_t),
                       axis=(1, 2, 3)))

    assert out.shape == (B, C, H, W)
    assert bool(jnp.all(jnp.isfinite(out)))
    assert bool(jnp.allclose(kl, kl_ref, rtol=1e-4, atol=1e-2)), (kl, kl_ref)

    # eps is drawn in the wrapper with the same key -> sample is exactly
    # mean + eps * std.
    eps_ref = jax.random.normal(k_eps, (B, C * H * W),
                                dtype=z.dtype).reshape(B, C, H, W)
    out_ref = mean_t + eps_ref * std_t
    assert bool(jnp.allclose(out, out_ref, rtol=1e-5, atol=1e-5))

    # sample=False path: returns the mean exactly, same KL.
    out_det, kl_det = variational_diagonal_gaussian(z, k_eps, sample=False)
    out_det = jax.block_until_ready(out_det)
    assert bool(jnp.array_equal(out_det, mean_t))
    assert bool(jnp.allclose(kl_det, kl_ref, rtol=1e-4, atol=1e-2))

    print("KERNEL_OK")
</pallas_src>

<mosaic_0001>
module attributes {stable_mosaic.version = 11 : i64} {
  func.func @_vdg_sample_kernel(%arg0: i32, %arg1: i32, %arg2: memref<2x1024xf32, #tpu.memory_space<vmem>>, %arg3: memref<2x1024xf32, #tpu.memory_space<vmem>>, %arg4: memref<2x1024xf32, #tpu.memory_space<vmem>>, %arg5: memref<2x1024xf32, #tpu.memory_space<vmem>>, %arg6: memref<1x1x1xf32, #tpu.memory_space<vmem>>) attributes {dimension_semantics = [#tpu.dimension_semantics<parallel>, #tpu.dimension_semantics<arbitrary>], iteration_bounds = array<i64: 1, 1>, scalar_prefetch = 0 : i64, scratch_operands = 0 : i64, tpu.core_type = #tpu.core_type<tc>, window_params = [{transform_indices = @transform_0, window_bounds = array<i64: 2, 1024>}, {transform_indices = @transform_1, window_bounds = array<i64: 2, 1024>}, {transform_indices = @transform_2, window_bounds = array<i64: 2, 1024>}, {transform_indices = @transform_3, window_bounds = array<i64: 2, 1024>}, {transform_indices = @transform_4, window_bounds = array<i64: 1, 1, 1>}]} {
    %c0 = arith.constant 0 : index
    %c0_0 = arith.constant 0 : index
    %0 = vector.load %arg2[%c0, %c0_0] : memref<2x1024xf32, #tpu.memory_space<vmem>>, vector<2x1024xf32>
    %c0_1 = arith.constant 0 : index
    %c0_2 = arith.constant 0 : index
    %1 = vector.load %arg3[%c0_1, %c0_2] : memref<2x1024xf32, #tpu.memory_space<vmem>>, vector<2x1024xf32>
    %c0_3 = arith.constant 0 : index
    %c0_4 = arith.constant 0 : index
    %2 = vector.load %arg4[%c0_3, %c0_4] : memref<2x1024xf32, #tpu.memory_space<vmem>>, vector<2x1024xf32>
    %cst = arith.constant 5.000000e-01 : f32
    %3 = vector.broadcast %cst : f32 to vector<2x1024xf32>
    %4 = arith.mulf %3, %1 : vector<2x1024xf32>
    %5 = math.exp %4 : vector<2x1024xf32>
    %6 = arith.mulf %2, %5 : vector<2x1024xf32>
    %7 = arith.addf %0, %6 : vector<2x1024xf32>
    %c0_5 = arith.constant 0 : index
    %c0_6 = arith.constant 0 : index
    %8 = vector.load %arg5[%c0_5, %c0_6] : memref<2x1024xf32, #tpu.memory_space<vmem>>, vector<2x1024xf32>
    tpu.vector_store %arg5[%c0_5, %c0_6], %7 {strides = array<i32>} : memref<2x1024xf32, #tpu.memory_space<vmem>>, vector<2x1024xf32>,
    %cst_7 = arith.constant 1.000000e+00 : f32
    %9 = vector.broadcast %cst_7 : f32 to vector<2x1024xf32>
    %10 = arith.addf %9, %1 : vector<2x1024xf32>
    %11 = arith.mulf %0, %0 : vector<2x1024xf32>
    %12 = arith.subf %10, %11 : vector<2x1024xf32>
    %13 = arith.mulf %5, %5 : vector<2x1024xf32>
    %14 = arith.subf %12, %13 : vector<2x1024xf32>
    %cst_8 = arith.constant dense<0.000000e+00> : vector<2xf32>
    %15 = vector.multi_reduction <add>, %14, %cst_8 [1] : vector<2x1024xf32> to vector<2xf32>
    %16 = vector.shape_cast %15 : vector<2xf32> to vector<2x1xf32>
    %cst_9 = arith.constant dense<0.000000e+00> : vector<1xf32>
    %17 = vector.multi_reduction <add>, %16, %cst_9 [0] : vector<2x1xf32> to vector<1xf32>
    %18 = vector.shape_cast %17 : vector<1xf32> to vector<1x1xf32>
    %19 = vector.shape_cast %18 : vector<1x1xf32> to vector<1x1x1xf32>
    %c0_i32 = arith.constant 0 : i32
    %20 = arith.cmpi eq, %arg1, %c0_i32 : i32
    %21 = arith.extui %20 : i1 to i32
    %c0_i32_10 = arith.constant 0 : i32
    %22 = arith.cmpi ne, %21, %c0_i32_10 : i32
    scf.if %22 {
      %cst_17 = arith.constant 0.000000e+00 : f32
      %26 = vector.broadcast %cst_17 : f32 to vector<1x1x1xf32>
      %c0_18 = arith.constant 0 : index
      %c0_19 = arith.constant 0 : index
      %c0_20 = arith.constant 0 : index
      %27 = vector.load %arg6[%c0_18, %c0_19, %c0_20] : memref<1x1x1xf32, #tpu.memory_space<vmem>>, vector<1x1x1xf32>
      tpu.vector_store %arg6[%c0_18, %c0_19, %c0_20], %26 {strides = array<i32>} : memref<1x1x1xf32, #tpu.memory_space<vmem>>, vector<1x1x1xf32>,
    } else {
    }
    %c0_11 = arith.constant 0 : index
    %c0_12 = arith.constant 0 : index
    %c0_13 = arith.constant 0 : index
    %23 = vector.load %arg6[%c0_11, %c0_12, %c0_13] : memref<1x1x1xf32, #tpu.memory_space<vmem>>, vector<1x1x1xf32>
    %24 = arith.addf %23, %19 : vector<1x1x1xf32>
    %c0_14 = arith.constant 0 : index
    %c0_15 = arith.constant 0 : index
    %c0_16 = arith.constant 0 : index
    %25 = vector.load %arg6[%c0_14, %c0_15, %c0_16] : memref<1x1x1xf32, #tpu.memory_space<vmem>>, vector<1x1x1xf32>
    tpu.vector_store %arg6[%c0_14, %c0_15, %c0_16], %24 {strides = array<i32>} : memref<1x1x1xf32, #tpu.memory_space<vmem>>, vector<1x1x1xf32>,
    return
  }
  func.func @transform_0(%arg0: i32, %arg1: i32) -> (i32, i32) {
    %c0_i32 = arith.constant 0 : i32
    return %arg0, %arg1 : i32, i32
  }
  func.func @transform_1(%arg0: i32, %arg1: i32) -> (i32, i32) {
    %c1_i32 = arith.constant 1 : i32
    %0 = arith.addi %arg1, %c1_i32 : i32
    %c0_i32 = arith.constant 0 : i32
    return %arg0, %0 : i32, i32
  }
  func.func @transform_2(%arg0: i32, %arg1: i32) -> (i32, i32) {
    %c0_i32 = arith.constant 0 : i32
    return %arg0, %arg1 : i32, i32
  }
  func.func @transform_3(%arg0: i32, %arg1: i32) -> (i32, i32) {
    %c0_i32 = arith.constant 0 : i32
    return %arg0, %arg1 : i32, i32
  }
  func.func @transform_4(%arg0: i32, %arg1: i32) -> (i32, i32, i32) {
    %c0_i32 = arith.constant 0 : i32
    %c0_i32_0 = arith.constant 0 : i32
    %c0_i32_1 = arith.constant 0 : i32
    return %arg0, %c0_i32, %c0_i32_0 : i32, i32, i32
  }
}

</mosaic_0001>

<llo_original>
// kernel: tpu_custom_call.1
$region0: #{tpu_custom_call.1}
  #allocation0 [shape = 'u32[]', space=smem, size = 0x4, offset = 0x4, fixed_abs, tag = 'smem constant byte address 0x4 - core index']
  #allocation1 [shape = 'u32[144,128]{1,0:T(1,128)}', space=vmem, size = 0x12000, scoped, tag = 'internal scratch']
  %s0 = inlined_call_operand.hbm [shape: f32[2,2048], index: 0, kind: input, shape index: {}]
  %s1 = inlined_call_operand.hbm [shape: f32[2,2048], index: 1, kind: input, shape index: {}]
  %s2 = inlined_call_operand.hbm [shape: f32[2,1024], index: 2, kind: input, shape index: {}]
  %s3 = inlined_call_operand.hbm [shape: f32[2,1024], index: 3, kind: output, shape index: {0}]
  %s4 = inlined_call_operand.hbm [shape: f32[1,1,1], index: 4, kind: output, shape index: {1}]
  %5 = xla_tuple %s3, %s4
  %s6 = sld [smem:[#allocation0]]
  $region46: #{tpu_custom_call.1} parent=0
    _
  %s8 = ssub.s32 1, %s6
  %s9 = scalar_select 0, %s8, %s6
  $region1: #{tpu_custom_call.1} parent=0
    #allocation2 [shape = 'u8[8192]{0}', space=vmem, size = 0x2000, scoped, tag = 'input window, operand 0, single buffered']
    #allocation3 [shape = 's32[1]{0}', space=sflag, size = 0x4, scoped, tag = 'scoped memory for tpu_custom_call.1']
    #allocation4 [shape = 's32[1]{0}', space=sflag, size = 0x4, scoped, tag = 'scoped memory for tpu_custom_call.1']
    #allocation5 [shape = 'u8[8192]{0}', space=vmem, size = 0x2000, scoped, tag = 'input window, operand 1, single buffered']
    #allocation6 [shape = 's32[1]{0}', space=sflag, size = 0x4, scoped, tag = 'scoped memory for tpu_custom_call.1']
    #allocation7 [shape = 'u8[8192]{0}', space=vmem, size = 0x2000, scoped, tag = 'input window, operand 2, single buffered']
    #allocation8 [shape = 'u8[8192]{0}', space=vmem, size = 0x2000, scoped, tag = 'output window, operand 0, single buffered']
    #allocation9 [shape = 'u8[512]{0}', space=vmem, size = 0x400, scoped, tag = 'output window, operand 1, single buffered']
    #allocation10 [shape = 's32[1]{0}', space=sflag, size = 0x4, scoped, tag = 'scoped memory for tpu_custom_call.1']
    %10 = vsyncpa [#allocation3], 0
    %11 = vsyncpa [#allocation6], 0
    %12 = vsyncpa [#allocation4], 0
    %13 = vsyncpa [#allocation10], 0
    // Predicated region
    $region2: #{tpu_custom_call.1} parent=1 // pred_check
      _
    $region3: #{tpu_custom_call.1} parent=1 // pred_check_branch
      %15 = sbr.rel (0) target = $region5
    $region4: #{tpu_custom_call.1} parent=1 // pred_region
      %s17 = ssub.s32 256, 256
      %18 = vsyncadd [#allocation3], %s17
      %s20 = sshll.u32 [#allocation2], 4
      %s21 = int_to_ptr.vmem [resolvable:$true] %s20
      %23 = dma.hbm_to_vmem [thread:$0]  %s0, 256, %s21, [#allocation3]
    $region5: #{tpu_custom_call.1} parent=1 // pred_fallthru
      _
    // Predicated region
    $region6: #{tpu_custom_call.1} parent=1 // pred_check
      _
    $region7: #{tpu_custom_call.1} parent=1 // pred_check_branch
      %25 = sbr.rel (0) target = $region9
    $region8: #{tpu_custom_call.1} parent=1 // pred_region
      %s26 = sadd.s32 0, 1
      %s27 = smul.u32 8, %s26
      %s29 = ssub.s32 256, 256
      %30 = vsyncadd [#allocation6], %s29
      %s31 = smul.addr %s27, 32
      %s32 = scalar_lea.hbm %s1, %s31
      %s34 = sshll.u32 [#allocation5], 4
      %s35 = int_to_ptr.vmem [resolvable:$true] %s34
      %37 = dma.hbm_to_vmem [thread:$0]  %s32, 256, %s35, [#allocation6]
    $region9: #{tpu_custom_call.1} parent=1 // pred_fallthru
      _
    // Predicated region
    $region10: #{tpu_custom_call.1} parent=1 // pred_check
      _
    $region11: #{tpu_custom_call.1} parent=1 // pred_check_branch
      %39 = sbr.rel (0) target = $region13
    $region12: #{tpu_custom_call.1} parent=1 // pred_region
      %s41 = ssub.s32 256, 256
      %42 = vsyncadd [#allocation6], %s41
      %s44 = sshll.u32 [#allocation7], 4
      %s45 = int_to_ptr.vmem [resolvable:$true] %s44
      %47 = dma.hbm_to_vmem [thread:$0]  %s2, 256, %s45, [#allocation6]
    $region13: #{tpu_custom_call.1} parent=1 // pred_fallthru
      _
    // Predicated region
    $region14: #{tpu_custom_call.1} parent=1 // pred_check
      _
    $region15: #{tpu_custom_call.1} parent=1 // pred_check_branch
      %49 = sbr.rel (0) target = $region17
    $region16: #{tpu_custom_call.1} parent=1 // pred_region
      %50 = dma.done [#allocation3], 256
    $region17: #{tpu_custom_call.1} parent=1 // pred_fallthru
      _
    // Predicated region
    $region18: #{tpu_custom_call.1} parent=1 // pred_check
      _
    $region19: #{tpu_custom_call.1} parent=1 // pred_check_branch
      %52 = sbr.rel (0) target = $region21
    $region20: #{tpu_custom_call.1} parent=1 // pred_region
      %53 = dma.done [#allocation6], 256
    $region21: #{tpu_custom_call.1} parent=1 // pred_fallthru
      _
    // Predicated region
    $region22: #{tpu_custom_call.1} parent=1 // pred_check
      _
    $region23: #{tpu_custom_call.1} parent=1 // pred_check_branch
      %55 = sbr.rel (0) target = $region25
    $region24: #{tpu_custom_call.1} parent=1 // pred_region
      %56 = dma.done [#allocation6], 256
    $region25: #{tpu_custom_call.1} parent=1 // pred_fallthru
      _
    %s57 = sadd.s32 0, 1
    %s58 = smul.u32 8, %s57
    %v59 = vld [vmem:[#allocation2] sm:$0xff]
    %v60 = vld [vmem:[#allocation2 + $0x8] sm:$0xff]
    %v61 = vld [vmem:[#allocation5] sm:$0xff]
    %v62 = vld [vmem:[#allocation5 + $0x8] sm:$0xff]
    %v63 = vld [vmem:[#allocation7] sm:$0xff]
    %v64 = vld [vmem:[#allocation7 + $0x8] sm:$0xff]
    %v65 = vmul.f32 %v61, 0.5
    %v66 = vmul.f32 %v62, 0.5
    %v67 = vmul.f32 %v65, 1.442695
    %v68 = vpow.pop %v67
    %v69 = vmul.f32 %v66, 1.442695
    %v70 = vpow.pop %v69
    %v71 = vmul.f32 %v63, %v68
    %v72 = vmul.f32 %v64, %v70
    %v73 = vadd.f32 %v59, %v71
    %v74 = vadd.f32 %v60, %v72
    %75 = vst [vmem:[#allocation8] sm:$0xff] %v73
    %76 = vst [vmem:[#allocation8 + $0x8] sm:$0xff] %v74
    %v77 = vadd.f32 %v61, 1.0
    %v78 = vadd.f32 %v62, 1.0
    %v79 = vmul.f32 %v59, %v59
    %v80 = vmul.f32 %v60, %v60
    %v81 = vsub.f32 %v77, %v79
    %v82 = vsub.f32 %v78, %v80
    %v83 = vmul.f32 %v68, %v68
    %v84 = vmul.f32 %v70, %v70
    %v85 = vsub.f32 %v81, %v83
    %v86 = vsub.f32 %v82, %v84
    %v89 = vcombine.high %v85, %v85
    %v91 = vunpack.c.l.s4 1983009808
    %v92 = vunpack.c.0.s8 %v91
    %v93 = vlaneseq
    %v94 = vshrl.u32 %v93, 7
    %v95 = vsub.s32 %v92, %v94
    %v96 = vrot.slane %v85, %v95
    %v98 = vunpack.c.l.s4 1983009808
    %v99 = vunpack.c.0.s8 %v98
    %v100 = vlaneseq
    %v101 = vshrl.u32 %v100, 7
    %v102 = vsub.s32 %v99, %v101
    %v103 = vrot.slane %v89, %v102
    %v104 = vcombine.high %v96, %v96
    %v105 = vcombine.high %v103, %v103
    %v106 = vcombine.high %v86, %v86
    %v108 = vunpack.c.l.s4 1983009808
    %v109 = vunpack.c.0.s8 %v108
    %v110 = vlaneseq
    %v111 = vshrl.u32 %v110, 7
    %v112 = vsub.s32 %v109, %v111
    %v113 = vrot.slane %v86, %v112
    %v115 = vunpack.c.l.s4 1983009808
    %v116 = vunpack.c.0.s8 %v115
    %v117 = vlaneseq
    %v118 = vshrl.u32 %v117, 7
    %v119 = vsub.s32 %v116, %v118
    %v120 = vrot.slane %v106, %v119
    %v121 = vcombine.high %v113, %v113
    %v122 = vcombine.high %v120, %v120
    %vm131 = vcmask 1041408
    %v132 = vsel %vm131, %v96, 0.0
    %v133 = vsel %vm131, %v104, 0.0
    %v134 = vadd.f32 %v132, %v133
    %v135 = vsel %vm131, %v103, 0.0
    %v136 = vadd.f32 %v134, %v135
    %v137 = vsel %vm131, %v105, 0.0
    %v138 = vadd.f32 %v136, %v137
    %v139 = vsel %vm131, %v113, 0.0
    %v140 = vadd.f32 %v138, %v139
    %v141 = vsel %vm131, %v121, 0.0
    %v142 = vadd.f32 %v140, %v141
    %v143 = vsel %vm131, %v120, 0.0
    %v144 = vadd.f32 %v142, %v143
    %v145 = vsel %vm131, %v122, 0.0
    %v146 = vadd.f32 %v144, %v145
    %147 = vadd.xlane.f32.xlu0 %v146
    %v148 = vpop.xlane.xlu0 %147
    %v149 = vsel %vm131, %v148, 0.0
    %v150 = vrot.slane %v149, 4
    %v151 = vadd.f32 %v149, %v150
    %v152 = vrot.slane %v151, 2
    %v153 = vadd.f32 %v151, %v152
    %v154 = vrot.slane %v153, 1
    %v155 = vadd.f32 %v153, %v154
    %p156 = scmp.eq.s32.totalorder 0, 0
    // Predicated region
    $region26: #{tpu_custom_call.1} parent=1 // pred_check
      %p157 = pneg %p156
    $region27: #{tpu_custom_call.1} parent=1 // pred_check_branch
      %159 = sbr.rel (%p157) target = $region29
    $region28: #{tpu_custom_call.1} parent=1 // pred_region
      %vm160 = vcmask 0
      %161 = vst.msk [vmem:[#allocation9] sm:$0x1] %vm160, 0.0
    $region29: #{tpu_custom_call.1} parent=1 // pred_fallthru
      _
    %v162 = vld [vmem:[#allocation9] sm:$0x1]
    %v163 = vadd.f32 %v162, %v155
    %vm164 = vcmask 0
    %165 = vst.msk [vmem:[#allocation9] sm:$0x1] %vm164, %v163
    // Predicated region
    $region30: #{tpu_custom_call.1} parent=1 // pred_check
      _
    $region31: #{tpu_custom_call.1} parent=1 // pred_check_branch
      %167 = sbr.rel (0) target = $region33
    $region32: #{tpu_custom_call.1} parent=1 // pred_region
      %s169 = ssub.s32 256, 256
      %170 = vsyncadd [#allocation4], %s169
      %s172 = sshll.u32 [#allocation8], 4
      %s173 = int_to_ptr.vmem [resolvable:$true] %s172
      %175 = dma.vmem_to_hbm [thread:$0]  %s173, 256, %s3, [#allocation4]
    $region33: #{tpu_custom_call.1} parent=1 // pred_fallthru
      _
    // Predicated region
    $region34: #{tpu_custom_call.1} parent=1 // pred_check
      _
    $region35: #{tpu_custom_call.1} parent=1 // pred_check_branch
      %177 = sbr.rel (0) target = $region37
    $region36: #{tpu_custom_call.1} parent=1 // pred_region
      %s179 = ssub.s32 16, 16
      %180 = vsyncadd [#allocation10], %s179
      %s182 = sshll.u32 [#allocation9], 4
      %s183 = int_to_ptr.vmem [resolvable:$true] %s182
      %185 = dma.vmem_to_hbm [thread:$0]  %s183, 16, %s4, [#allocation10]
    $region37: #{tpu_custom_call.1} parent=1 // pred_fallthru
      _
    // Predicated region
    $region38: #{tpu_custom_call.1} parent=1 // pred_check
      _
    $region39: #{tpu_custom_call.1} parent=1 // pred_check_branch
      %187 = sbr.rel (0) target = $region41
    $region40: #{tpu_custom_call.1} parent=1 // pred_region
      %188 = dma.done [#allocation4], 256
    $region41: #{tpu_custom_call.1} parent=1 // pred_fallthru
      _
    // Predicated region
    $region42: #{tpu_custom_call.1} parent=1 // pred_check
      _
    $region43: #{tpu_custom_call.1} parent=1 // pred_check_branch
      %190 = sbr.rel (0) target = $region45
    $region44: #{tpu_custom_call.1} parent=1 // pred_region
      %191 = dma.done [#allocation10], 16
    $region45: #{tpu_custom_call.1} parent=1 // pred_fallthru
      _
    %192 = vsyncpa [#allocation3], 1
    %193 = vsyncpa [#allocation6], 1
    %194 = vsyncpa [#allocation4], 1
    %195 = vsyncpa [#allocation10], 1

</llo_original>
